<compile_context>
chip_gen: v5e
topology: v5e:2x2
jax: 0.10.0
libtpu: 0.0.40
codegen_flags: <defaults>
</compile_context>

<pallas_src>
import functools

import jax
import jax.numpy as jnp
from jax.experimental import pallas as pl
from jax.experimental.pallas import tpu as pltpu


def _round_up(x, m):
    return (x + m - 1) // m * m


def _pick_row_tile(rows):
    """Pick (Tm, Np): row tile (multiple of 16, MXU-friendly when possible) and
    per-batch padded row count (a multiple of Tm, >= rows)."""
    for tm in (512, 256, 128):
        np_pad = _round_up(rows, tm)
        if np_pad - rows <= max(rows // 3, 16):   # <= ~33% per-batch pad waste
            return tm, np_pad
    tm = min(_round_up(rows, 16), 512)            # tiny-N case (e.g. demo N+1=17)
    return tm, _round_up(rows, tm)


def _proj_kernel(p_ref, w_ref, pos_ref, o_ref, *, tm, n_pos_blocks):
    # p_ref  : (Tm, Kp) bf16 -- row tile of flattened patches (row 0 per batch = 0 -> cls)
    # w_ref  : (Kp, Ep) bf16 -- projection weight, grid-invariant (DMA'd once)
    # pos_ref: (Np, Ep) f32  -- fused cls/pos(+bias) table, grid-invariant (DMA'd once)
    # o_ref  : (Tm, Ep)      -- output tile (consumer dtype)
    acc = jnp.dot(p_ref[...], w_ref[...], preferred_element_type=jnp.float32)
    if n_pos_blocks == 1:
        pos = pos_ref[...]
    else:
        row0 = pl.multiple_of((pl.program_id(0) % n_pos_blocks) * tm, tm)
        pos = pos_ref[pl.ds(row0, tm), :]
    o_ref[...] = (acc + pos).astype(o_ref.dtype)


def patch_embedding(x, weight, bias, cls_token, positions, *, patch_size,
                    out_dtype=None):
    """x: (B, C, H, W) NCHW like the PyTorch module.

    weight:    (E, C, p, p)  (PyTorch Conv2d layout)
    bias:      (E,)
    cls_token: (1, 1, E)
    positions: (N+1, E)
    returns:   (B, N+1, E) in `out_dtype` (default: x.dtype)
    """
    B, C, H, W = x.shape
    p = patch_size
    assert H % p == 0 and W % p == 0, "img size must be a multiple of patch_size"
    E = weight.shape[0]
    nh, nw = H // p, W // p
    N = nh * nw
    K = C * p * p
    rows = N + 1                                   # cls row + N patches per batch
    out_dtype = x.dtype if out_dtype is None else out_dtype
    out_itemsize = jnp.dtype(out_dtype).itemsize

    # --- glue: bf16 FIRST, then patchify (reshape/transpose only) ------------
    xb = x.astype(jnp.bfloat16)
    patches = xb.reshape(B, C, nh, p, nw, p)
    patches = patches.transpose(0, 2, 4, 1, 3, 5).reshape(B, N, K)   # (B, N, K) bf16
    w_mat = weight.reshape(E, K).T.astype(jnp.bfloat16)              # (K, E) bf16

    # Fused per-row add table: row 0 = cls_token + positions[0];
    # rows 1..N = positions[1:] + conv bias. One f32 add in the kernel epilogue.
    pos_table = jnp.concatenate(
        [cls_token.reshape(1, E) + positions[0:1, :],
         positions[1:, :] + bias[None, :]], axis=0).astype(jnp.float32)  # (N+1, E)

    # --- tiling: lane-dense last dims, 16-aligned row tile --------------------
    Kp = _round_up(K, 128)
    Ep = _round_up(E, 128)
    Tm, Np = _pick_row_tile(rows)
    # Keep >= 4 row blocks when possible (v7x: 2 TCs share the parallel axis).
    while (B * Np) // Tm < 4 and Tm % 32 == 0:
        Tm //= 2
    n_pos_blocks = Np // Tm
    M_pad = B * Np

    # Pad: prepend one zero row per batch (cls), pad rows to Np, pad K to Kp.
    patches = jnp.pad(patches, ((0, 0), (1, Np - rows), (0, Kp - K)))
    patches = patches.reshape(M_pad, Kp)                             # (B*Np, Kp) bf16
    w_mat = jnp.pad(w_mat, ((0, Kp - K), (0, Ep - E)))               # (Kp, Ep) bf16
    pos_table = jnp.pad(pos_table, ((0, Np - rows), (0, Ep - E)))    # (Np, Ep) f32

    # --- pallas_call ----------------------------------------------------------
    grid = (M_pad // Tm,)                          # 1-D grid: Te == Ep, weight resident
    cost = pl.CostEstimate(
        flops=2 * M_pad * Kp * Ep,
        transcendentals=0,
        bytes_accessed=(M_pad * Kp * 2 + Kp * Ep * 2 + Np * Ep * 4
                        + M_pad * Ep * out_itemsize),
    )
    # Double-buffered footprint (constant-index operands still get 2 buffers).
    vmem_bytes = (2 * Tm * Kp * 2 + 2 * Kp * Ep * 2 + 2 * Np * Ep * 4
                  + 2 * Tm * Ep * out_itemsize)
    vmem_limit = int(min(max(2 * vmem_bytes + (8 << 20), 32 << 20), 48 << 20))

    kernel = functools.partial(_proj_kernel, tm=Tm, n_pos_blocks=n_pos_blocks)
    proj = pl.pallas_call(
        kernel,
        out_shape=jax.ShapeDtypeStruct((M_pad, Ep), out_dtype),
        grid_spec=pltpu.PrefetchScalarGridSpec(
            num_scalar_prefetch=0,
            grid=grid,
            in_specs=[
                pl.BlockSpec((Tm, Kp), lambda i: (i, 0)),
                pl.BlockSpec((Kp, Ep), lambda i: (0, 0)),   # grid-invariant weight
                pl.BlockSpec((Np, Ep), lambda i: (0, 0)),   # grid-invariant pos table
            ],
            out_specs=pl.BlockSpec((Tm, Ep), lambda i: (i, 0)),
        ),
        compiler_params=pltpu.CompilerParams(
            dimension_semantics=("parallel",),
            vmem_limit_bytes=vmem_limit,
        ),
        cost_estimate=cost,
    )(patches, w_mat, pos_table)

    # cls row is already row 0 of every batch: only strip row/lane padding.
    # (For typical ViT E % 128 == 0, so only the per-batch row padding is cut.)
    return proj.reshape(B, Np, Ep)[:, :rows, :E]


def reference(x, weight, bias, cls_token, positions, *, patch_size):
    """Plain-JAX (f32) reference mirroring the PyTorch forward."""
    B = x.shape[0]
    out = jax.lax.conv_general_dilated(
        x, weight,
        window_strides=(patch_size, patch_size),
        padding="VALID",
        dimension_numbers=("NCHW", "OIHW", "NCHW"),
    ) + bias[None, :, None, None]                           # (B, E, nh, nw)
    B_, E, nh, nw = out.shape
    out = out.reshape(B_, E, nh * nw).transpose(0, 2, 1)    # b (h w) e
    cls = jnp.broadcast_to(cls_token, (B, 1, E))
    out = jnp.concatenate([cls, out], axis=1)
    return out + positions[None, :, :]


if __name__ == "__main__":
    # Small shapes consistent with the module: in_channels=4, patch_size=4,
    # emb_size=32, img_size=16 -> N = (16//4)**2 = 16 patches, K = 4*4*4 = 64.
    B, C, IMG, P, E = 2, 4, 16, 4, 32
    N = (IMG // P) ** 2

    key = jax.random.PRNGKey(0)
    kx, kw, kb, kc, kp = jax.random.split(key, 5)
    x = jax.random.normal(kx, (B, C, IMG, IMG), dtype=jnp.float32)
    weight = jax.random.normal(kw, (E, C, P, P), dtype=jnp.float32) * 0.02
    bias = jax.random.normal(kb, (E,), dtype=jnp.float32) * 0.02
    cls_token = jax.random.normal(kc, (1, 1, E), dtype=jnp.float32)
    positions = jax.random.normal(kp, (N + 1, E), dtype=jnp.float32)

    out = patch_embedding(x, weight, bias, cls_token, positions, patch_size=P)
    out = jax.block_until_ready(out)

    ref = reference(x, weight, bias, cls_token, positions, patch_size=P)
    assert out.shape == (B, N + 1, E), out.shape
    # Tolerance loosened vs. pure-f32: matmul operands are cast to bf16.
    assert jnp.allclose(out, ref, atol=2e-2, rtol=2e-2), float(
        jnp.max(jnp.abs(out - ref)))

    print("KERNEL_OK")
</pallas_src>

<mosaic_0001>
module attributes {stable_mosaic.version = 11 : i64} {
  func.func @_proj_kernel(%arg0: i32, %arg1: memref<16x128xbf16, #tpu.memory_space<vmem>>, %arg2: memref<128x128xbf16, #tpu.memory_space<vmem>>, %arg3: memref<32x128xf32, #tpu.memory_space<vmem>>, %arg4: memref<16x128xf32, #tpu.memory_space<vmem>>) attributes {dimension_semantics = [#tpu.dimension_semantics<parallel>], iteration_bounds = array<i64: 4>, scalar_prefetch = 0 : i64, scratch_operands = 0 : i64, tpu.core_type = #tpu.core_type<tc>, window_params = [{transform_indices = @transform_0, window_bounds = array<i64: 16, 128>}, {pipeline_mode = #tpu.pipeline_mode<synchronous>, transform_indices = @transform_1, window_bounds = array<i64: 128, 128>}, {pipeline_mode = #tpu.pipeline_mode<synchronous>, transform_indices = @transform_2, window_bounds = array<i64: 32, 128>}, {transform_indices = @transform_3, window_bounds = array<i64: 16, 128>}]} {
    %c0 = arith.constant 0 : index
    %c0_0 = arith.constant 0 : index
    %0 = vector.load %arg1[%c0, %c0_0] : memref<16x128xbf16, #tpu.memory_space<vmem>>, vector<16x128xbf16>
    %c0_1 = arith.constant 0 : index
    %c0_2 = arith.constant 0 : index
    %1 = vector.load %arg2[%c0_1, %c0_2] : memref<128x128xbf16, #tpu.memory_space<vmem>>, vector<128x128xbf16>
    %cst = arith.constant dense<0.000000e+00> : vector<16x128xf32>
    %2 = tpu.matmul %0, %1, %cst {dimension_numbers = #tpu.dot_dimension_numbers<[1], [0], [0], [1], [0, 0, 1, 1], [], []>} : vector<16x128xbf16>, vector<128x128xbf16>, vector<16x128xf32> -> vector<16x128xf32>
    %c2_i32 = arith.constant 2 : i32
    %c0_i32 = arith.constant 0 : i32
    %3 = arith.cmpi eq, %c2_i32, %c0_i32 : i32
    %c1_i32 = arith.constant 1 : i32
    %4 = arith.select %3, %c1_i32, %c2_i32 : i32
    %5 = arith.remsi %arg0, %4 : i32
    %c0_i32_3 = arith.constant 0 : i32
    %6 = arith.cmpi ne, %5, %c0_i32_3 : i32
    %c0_i32_4 = arith.constant 0 : i32
    %7 = arith.cmpi slt, %5, %c0_i32_4 : i32
    %c0_i32_5 = arith.constant 0 : i32
    %8 = arith.cmpi slt, %4, %c0_i32_5 : i32
    %9 = arith.xori %7, %8 : i1
    %10 = arith.andi %9, %6 : i1
    %11 = arith.addi %5, %4 : i32
    %12 = arith.select %10, %11, %5 : i32
    %c16_i32 = arith.constant 16 : i32
    %13 = arith.muli %12, %c16_i32 : i32
    %14 = tpu.assume_multiple %13, 16 : i32
    %15 = arith.index_cast %14 : i32 to index
    %c0_6 = arith.constant 0 : index
    %16 = vector.load %arg3[%15, %c0_6] : memref<32x128xf32, #tpu.memory_space<vmem>>, vector<16x128xf32>
    %17 = arith.addf %2, %16 : vector<16x128xf32>
    %c0_7 = arith.constant 0 : index
    %c0_8 = arith.constant 0 : index
    %18 = vector.load %arg4[%c0_7, %c0_8] : memref<16x128xf32, #tpu.memory_space<vmem>>, vector<16x128xf32>
    tpu.vector_store %arg4[%c0_7, %c0_8], %17 {strides = array<i32>} : memref<16x128xf32, #tpu.memory_space<vmem>>, vector<16x128xf32>,
    return
  }
  func.func @transform_0(%arg0: i32) -> (i32, i32) {
    %c0_i32 = arith.constant 0 : i32
    %c0_i32_0 = arith.constant 0 : i32
    return %arg0, %c0_i32 : i32, i32
  }
  func.func @transform_1(%arg0: i32) -> (i32, i32) {
    %c0_i32 = arith.constant 0 : i32
    %c0_i32_0 = arith.constant 0 : i32
    %c0_i32_1 = arith.constant 0 : i32
    return %c0_i32, %c0_i32_0 : i32, i32
  }
  func.func @transform_2(%arg0: i32) -> (i32, i32) {
    %c0_i32 = arith.constant 0 : i32
    %c0_i32_0 = arith.constant 0 : i32
    %c0_i32_1 = arith.constant 0 : i32
    return %c0_i32, %c0_i32_0 : i32, i32
  }
  func.func @transform_3(%arg0: i32) -> (i32, i32) {
    %c0_i32 = arith.constant 0 : i32
    %c0_i32_0 = arith.constant 0 : i32
    return %arg0, %c0_i32 : i32, i32
  }
}

</mosaic_0001>

<llo_original>
// kernel: tpu_custom_call.1
$region0: #{tpu_custom_call.1}
  #allocation0 [shape = 'u32[]', space=smem, size = 0x4, offset = 0x4, fixed_abs, tag = 'smem constant byte address 0x4 - core index']
  #allocation1 [shape = 'u32[72,128]{1,0:T(1,128)}', space=vmem, size = 0x9000, scoped, tag = 'internal scratch']
  %s0 = inlined_call_operand.hbm [shape: bf16[64,128], index: 0, kind: input, shape index: {}]
  %s1 = inlined_call_operand.hbm [shape: bf16[128,128], index: 1, kind: input, shape index: {}]
  %s2 = inlined_call_operand.hbm [shape: f32[32,128], index: 2, kind: input, shape index: {}]
  %s3 = inlined_call_operand.hbm [shape: f32[64,128], index: 3, kind: output, shape index: {}]
  %s4 = sld [smem:[#allocation0]]
  $region57: #{tpu_custom_call.1} parent=0
    _
  %s6 = ssub.s32 1, %s4
  %s7 = scalar_select 0, %s6, %s4
  $region1: #{tpu_custom_call.1} parent=0
    #allocation2 [shape = 'u8[8192]{0}', space=vmem, size = 0x2000, scoped, tag = 'input window, operand 0']
    #allocation3 [shape = 's32[2]{0}', space=sflag, size = 0x8, scoped, tag = 'scoped memory for tpu_custom_call.1']
    #allocation4 [shape = 's32[2]{0}', space=sflag, size = 0x8, scoped, tag = 'scoped memory for tpu_custom_call.1']
    #allocation5 [shape = 'u8[32768]{0}', space=vmem, size = 0x8000, scoped, tag = 'input window, operand 1, single buffered']
    #allocation6 [shape = 's32[1]{0}', space=sflag, size = 0x4, scoped, tag = 'scoped memory for tpu_custom_call.1']
    #allocation7 [shape = 'u8[16384]{0}', space=vmem, size = 0x4000, scoped, tag = 'input window, operand 2, single buffered']
    #allocation8 [shape = 'u8[16384]{0}', space=vmem, size = 0x4000, scoped, tag = 'output window, operand 0']
    %8 = vsyncpa [#allocation3], 0
    %s9 = scalar_lea.sflag [#allocation3], 1
    %10 = vsyncpa %s9, 0
    %11 = vsyncpa [#allocation6], 0
    %12 = vsyncpa [#allocation4], 0
    %s13 = scalar_lea.sflag [#allocation4], 1
    %14 = vsyncpa %s13, 0
    loop: start=0, step=1, limit=6
    $region2: #{tpu_custom_call.1} parent=1 // loop_pre_header
      _
    $region3: #{tpu_custom_call.1} parent=1 // loop_header
      %s16 = sphi 0, %s20
      %p17 = scmp.ge.s32.totalorder %s16, 6
      %s26 = sphi 0, %s28
      %s29 = sphi 0, %s26
      %s30 = sphi 0, %s29
      %s46 = sphi 0, %s30
      %s50 = sphi 0, %s50
      %s52 = sphi 0, %s50
      %s53 = sphi 0, %s52
      %s67 = sphi 0, %s53
      %s71 = sphi 0, %s71
      %s73 = sphi 0, %s71
      %s74 = sphi 0, %s73
      %s88 = sphi 0, %s74
      %s94 = sphi 0, %s96
      %s97 = sphi 0, %s94
      %s98 = sphi 0, %s97
      %s114 = sphi 0, %s98
    $region4: #{tpu_custom_call.1} parent=1 // loop_header_branch
      %19 = sbr.rel (%p17) target = $region8
    $region5: #{tpu_custom_call.1} parent=1 // loop_body
      %s21 = ssub.s32 %s16, 1
      %s22 = ssub.s32 %s16, 2
      %s23 = sadd.s32 %s16, 1
      %s24 = ssub.s32 %s16, %s23
      %p25 = scmp.eq.s32.totalorder %s24, 0
      %s27 = sadd.s32 %s26, 1
      %s28 = scalar_select %p25, %s26, %s27
      %p31 = pneg %p25
      %p32 = scmp.eq.s32.totalorder %s16, 3
      %p33 = por %p31, %p32
      %p34 = scmp.ne.s32.totalorder %s26, %s29
      %p35 = scmp.eq.s32.totalorder %s16, 0
      %p36 = por %p34, %p35
      %p37 = scmp.ne.s32.totalorder %s26, %s29
      %p38 = scmp.eq.s32.totalorder %s21, 3
      %p39 = por %p37, %p38
      %p40 = scmp.ne.s32.totalorder %s29, %s30
      %p41 = scmp.eq.s32.totalorder %s21, 0
      %p42 = por %p40, %p41
      %p43 = scmp.ne.s32.totalorder %s29, %s30
      %p44 = scmp.eq.s32.totalorder %s22, 3
      %p45 = por %p43, %p44
      %p47 = scmp.ne.s32.totalorder %s30, %s46
      %p48 = scmp.eq.s32.totalorder %s22, 0
      %p49 = por %p47, %p48
      %s51 = sadd.s32 %s50, 1
      %p54 = scmp.eq.s32.totalorder %s16, 3
      %p55 = scmp.ne.s32.totalorder %s50, %s52
      %p56 = scmp.eq.s32.totalorder %s16, 0
      %p57 = por %p55, %p56
      %p58 = scmp.ne.s32.totalorder %s50, %s52
      %p59 = scmp.eq.s32.totalorder %s21, 3
      %p60 = por %p58, %p59
      %p61 = scmp.ne.s32.totalorder %s52, %s53
      %p62 = scmp.eq.s32.totalorder %s21, 0
      %p63 = por %p61, %p62
      %p64 = scmp.ne.s32.totalorder %s52, %s53
      %p65 = scmp.eq.s32.totalorder %s22, 3
      %p66 = por %p64, %p65
      %p68 = scmp.ne.s32.totalorder %s53, %s67
      %p69 = scmp.eq.s32.totalorder %s22, 0
      %p70 = por %p68, %p69
      %s72 = sadd.s32 %s71, 1
      %p75 = scmp.eq.s32.totalorder %s16, 3
      %p76 = scmp.ne.s32.totalorder %s71, %s73
      %p77 = scmp.eq.s32.totalorder %s16, 0
      %p78 = por %p76, %p77
      %p79 = scmp.ne.s32.totalorder %s71, %s73
      %p80 = scmp.eq.s32.totalorder %s21, 3
      %p81 = por %p79, %p80
      %p82 = scmp.ne.s32.totalorder %s73, %s74
      %p83 = scmp.eq.s32.totalorder %s21, 0
      %p84 = por %p82, %p83
      %p85 = scmp.ne.s32.totalorder %s73, %s74
      %p86 = scmp.eq.s32.totalorder %s22, 3
      %p87 = por %p85, %p86
      %p89 = scmp.ne.s32.totalorder %s74, %s88
      %p90 = scmp.eq.s32.totalorder %s22, 0
      %p91 = por %p89, %p90
      %s92 = ssub.s32 %s16, %s23
      %p93 = scmp.eq.s32.totalorder %s92, 0
      %s95 = sadd.s32 %s94, 1
      %s96 = scalar_select %p93, %s94, %s95
      %p99 = pneg %p93
      %p100 = scmp.eq.s32.totalorder %s16, 3
      %p101 = por %p99, %p100
      %p102 = scmp.ne.s32.totalorder %s94, %s97
      %p103 = scmp.eq.s32.totalorder %s16, 0
      %p104 = por %p102, %p103
      %p105 = scmp.ne.s32.totalorder %s94, %s97
      %p106 = scmp.eq.s32.totalorder %s21, 3
      %p107 = por %p105, %p106
      %p108 = scmp.ne.s32.totalorder %s97, %s98
      %p109 = scmp.eq.s32.totalorder %s21, 0
      %p110 = por %p108, %p109
      %p111 = scmp.ne.s32.totalorder %s97, %s98
      %p112 = scmp.eq.s32.totalorder %s22, 3
      %p113 = por %p111, %p112
      %p115 = scmp.ne.s32.totalorder %s98, %s114
      %p116 = scmp.eq.s32.totalorder %s22, 0
      %p117 = por %p115, %p116
      %p118 = scmp.le.s32.totalorder 1, %s16
      %p119 = scmp.lt.s32.totalorder %s16, 5
      %p120 = pnand %p118, %p119
      %p121 = pneg %p120
      // Predicated region
      $region9: #{tpu_custom_call.1} parent=5 // pred_check
        _
      $region10: #{tpu_custom_call.1} parent=5 // pred_check_branch
        %123 = sbr.rel (%p120) target = $region12
      $region11: #{tpu_custom_call.1} parent=5 // pred_region
        %s124 = ssub.s32 %s16, 1
        // Predicated region
        $region13: #{tpu_custom_call.1} parent=11 // pred_check
          %p125 = pneg %p63
        $region14: #{tpu_custom_call.1} parent=11 // pred_check_branch
          %127 = sbr.rel (%p125) target = $region16
        $region15: #{tpu_custom_call.1} parent=11 // pred_region
          %129 = vsyncadd [#allocation6], 0
          %s130 = sshll.u32 %s1, 4
          %s131 = int_to_ptr.hbm [resolvable:$true] %s130
          %s132 = sshll.u32 [#allocation5], 4
          %s133 = int_to_ptr.vmem [resolvable:$true] %s132
          %138 = dma.hbm_to_vmem [thread:$0]  %s131, 1024, %s133, [#allocation6], 64, 64, 4
        $region16: #{tpu_custom_call.1} parent=11 // pred_fallthru
          _
        // Predicated region
        $region17: #{tpu_custom_call.1} parent=11 // pred_check
          %p139 = pneg %p84
        $region18: #{tpu_custom_call.1} parent=11 // pred_check_branch
          %141 = sbr.rel (%p139) target = $region20
        $region19: #{tpu_custom_call.1} parent=11 // pred_region
          %143 = vsyncadd [#allocation6], 0
          %s144 = sshll.u32 %s2, 4
          %s145 = int_to_ptr.hbm [resolvable:$true] %s144
          %s146 = sshll.u32 [#allocation7], 4
          %s147 = int_to_ptr.vmem [resolvable:$true] %s146
          %152 = dma.hbm_to_vmem [thread:$0]  %s145, 512, %s147, [#allocation6], 128, 128, 8
        $region20: #{tpu_custom_call.1} parent=11 // pred_fallthru
          _
      $region12: #{tpu_custom_call.1} parent=5 // pred_fallthru
        _
      %p153 = scmp.lt.s32.totalorder %s16, 4
      // Predicated region
      $region21: #{tpu_custom_call.1} parent=5 // pred_check
        %p154 = pneg %p153
      $region22: #{tpu_custom_call.1} parent=5 // pred_check_branch
        %156 = sbr.rel (%p154) target = $region24
      $region23: #{tpu_custom_call.1} parent=5 // pred_region
        // Predicated region
        $region25: #{tpu_custom_call.1} parent=23 // pred_check
          %p157 = pneg %p36
        $region26: #{tpu_custom_call.1} parent=23 // pred_check_branch
          %159 = sbr.rel (%p157) target = $region28
        $region27: #{tpu_custom_call.1} parent=23 // pred_region
          %s160 = sand.u32 %s26, 1
          %s161 = scalar_lea.sflag [#allocation3], %s160
          %s162 = sand.u32 %s26, 1
          %s163 = smul.addr %s162, 8
          %s164 = scalar_lea.vmem [#allocation2], %s163
          %s165 = smul.u32 2, %s16
          %167 = vsyncadd %s161, 0
          %s168 = smul.addr %s165, 4
          %s169 = scalar_lea.hbm %s0, %s168
          %s170 = sshll.u32 %s169, 4
          %s171 = int_to_ptr.hbm [resolvable:$true] %s170
          %s172 = sshll.u32 %s164, 4
          %s173 = int_to_ptr.vmem [resolvable:$true] %s172
          %178 = dma.hbm_to_vmem [thread:$0]  %s171, 128, %s173, %s161, 64, 64, 4
        $region28: #{tpu_custom_call.1} parent=23 // pred_fallthru
          _
      $region24: #{tpu_custom_call.1} parent=5 // pred_fallthru
        _
      %p179 = scmp.le.s32.totalorder 1, %s16
      %p180 = scmp.lt.s32.totalorder %s16, 5
      %p181 = pnand %p179, %p180
      %p182 = pneg %p181
      // Predicated region
      $region29: #{tpu_custom_call.1} parent=5 // pred_check
        _
      $region30: #{tpu_custom_call.1} parent=5 // pred_check_branch
        %184 = sbr.rel (%p181) target = $region32
      $region31: #{tpu_custom_call.1} parent=5 // pred_region
        %s185 = ssub.s32 %s16, 1
        %s186 = sand.u32 %s29, 1
        %s187 = scalar_lea.sflag [#allocation3], %s186
        %s188 = sand.u32 %s29, 1
        %s189 = smul.addr %s188, 8
        %s190 = scalar_lea.vmem [#allocation2], %s189
        // Predicated region
        $region33: #{tpu_custom_call.1} parent=31 // pred_check
          %p191 = pneg %p42
        $region34: #{tpu_custom_call.1} parent=31 // pred_check_branch
          %193 = sbr.rel (%p191) target = $region36
        $region35: #{tpu_custom_call.1} parent=31 // pred_region
          %195 = dma.done %s187, 128
        $region36: #{tpu_custom_call.1} parent=31 // pred_fallthru
          _
        // Predicated region
        $region37: #{tpu_custom_call.1} parent=31 // pred_check
          %p196 = pneg %p63
        $region38: #{tpu_custom_call.1} parent=31 // pred_check_branch
          %198 = sbr.rel (%p196) target = $region40
        $region39: #{tpu_custom_call.1} parent=31 // pred_region
          %200 = dma.done [#allocation6], 1024
        $region40: #{tpu_custom_call.1} parent=31 // pred_fallthru
          _
        // Predicated region
        $region41: #{tpu_custom_call.1} parent=31 // pred_check
          %p201 = pneg %p84
        $region42: #{tpu_custom_call.1} parent=31 // pred_check_branch
          %203 = sbr.rel (%p201) target = $region44
        $region43: #{tpu_custom_call.1} parent=31 // pred_region
          %205 = dma.done [#allocation6], 512
        $region44: #{tpu_custom_call.1} parent=31 // pred_fallthru
          _
        %s206 = sand.u32 %s29, 1
        %s207 = scalar_lea.sflag [#allocation3], %s206
        %s208 = sand.u32 %s29, 1
        %s209 = smul.addr %s208, 8
        %s210 = scalar_lea.vmem [#allocation2], %s209
        %p211 = pneg %p42
        %p212 = pneg %p39
        %p213 = pneg %p63
        %p214 = pneg %p60
        %p215 = pneg %p84
        %p216 = pneg %p81
        %p217 = pneg %p110
        %p218 = pneg %p107
        %s219 = sand.u32 %s97, 1
        %s220 = scalar_lea.sflag [#allocation4], %s219
        %s221 = sand.u32 %s97, 1
        %s222 = smul.addr %s221, 16
        %s223 = scalar_lea.vmem [#allocation8], %s222
        %s224 = smul.u32 2, %s21
        %s225 = smul.u32 2, %s21
        %v226 = vld [vmem:[%s190] sm:$0xf]
        %v227 = vld [vmem:[%s190 + $0x4] sm:$0xf]
        %v228 = vld [vmem:[#allocation5] sm:$0xf]
        %v229 = vld [vmem:[#allocation5 + $0x4] sm:$0xf]
        %v230 = vld [vmem:[#allocation5 + $0x8] sm:$0xf]
        %v231 = vld [vmem:[#allocation5 + $0xc] sm:$0xf]
        %v232 = vld [vmem:[#allocation5 + $0x10] sm:$0xf]
        %v233 = vld [vmem:[#allocation5 + $0x14] sm:$0xf]
        %v234 = vld [vmem:[#allocation5 + $0x18] sm:$0xf]
        %v235 = vld [vmem:[#allocation5 + $0x1c] sm:$0xf]
        %v236 = vld [vmem:[#allocation5 + $0x20] sm:$0xf]
        %v237 = vld [vmem:[#allocation5 + $0x24] sm:$0xf]
        %v238 = vld [vmem:[#allocation5 + $0x28] sm:$0xf]
        %v239 = vld [vmem:[#allocation5 + $0x2c] sm:$0xf]
        %v240 = vld [vmem:[#allocation5 + $0x30] sm:$0xf]
        %v241 = vld [vmem:[#allocation5 + $0x34] sm:$0xf]
        %v242 = vld [vmem:[#allocation5 + $0x38] sm:$0xf]
        %v243 = vld [vmem:[#allocation5 + $0x3c] sm:$0xf]
        %p244 = scmp.lt.s32.totalorder %s21, 0
        %s245 = ssub.s32 0, %s21
        %s246 = scalar_select %p244, %s245, %s21
        %s247 = sand.u32 %s246, 1
        %s248 = ssub.s32 0, %s247
        %s249 = scalar_select %p244, %s248, %s247
        %p250 = scmp.ne.s32.totalorder %s249, 0
        %p251 = scmp.lt.s32.totalorder %s249, 0
        %p252 = pnand %p251, %p250
        %p253 = pneg %p252
        %s254 = sadd.s32 %s249, 2
        %s255 = scalar_select %p253, %s254, %s249
        %s256 = smul.u32 %s255, 16
        %s257 = scalar_lea.vmem [#allocation7], %s256
        %v258 = vld [vmem:[%s257] sm:$0xff]
        %v259 = vld [vmem:[%s257 + $0x8] sm:$0xff]
        %v262 = vunpack.c.l.b16 %v226
        %v263 = vunpack.c.l.b16 %v227
        %v264 = vpack.c.b16 %v263, %v262
        %v282 = vunpack.c.l.b16 %v228
        %v283 = vunpack.c.l.b16 %v229
        %v284 = vunpack.c.l.b16 %v230
        %v285 = vunpack.c.l.b16 %v231
        %v286 = vunpack.c.l.b16 %v232
        %v287 = vunpack.c.l.b16 %v233
        %v288 = vunpack.c.l.b16 %v234
        %v289 = vunpack.c.l.b16 %v235
        %v290 = vunpack.c.l.b16 %v236
        %v291 = vunpack.c.l.b16 %v237
        %v292 = vunpack.c.l.b16 %v238
        %v293 = vunpack.c.l.b16 %v239
        %v294 = vunpack.c.l.b16 %v240
        %v295 = vunpack.c.l.b16 %v241
        %v296 = vunpack.c.l.b16 %v242
        %v297 = vunpack.c.l.b16 %v243
        %v298 = vpack.c.b16 %v283, %v282
        %v299 = vpack.c.b16 %v285, %v284
        %v300 = vpack.c.b16 %v287, %v286
        %v301 = vpack.c.b16 %v289, %v288
        %v302 = vpack.c.b16 %v291, %v290
        %v303 = vpack.c.b16 %v293, %v292
        %v304 = vpack.c.b16 %v295, %v294
        %v305 = vpack.c.b16 %v297, %v296
        %314 = vmatpush.bf16.msra.mxu0 %v305
        %315 = vmatpush.bf16.msra.mxu0 %v304
        %316 = vmatpush.bf16.msra.mxu0 %v303
        %317 = vmatpush.bf16.msra.mxu0 %v302
        %318 = vmatpush.bf16.msra.mxu0 %v301
        %319 = vmatpush.bf16.msra.mxu0 %v300
        %320 = vmatpush.bf16.msra.mxu0 %v299
        %321 = vmatpush.bf16.msra.mxu0 %v298
        %322 = vmatmul.bf16.gmra.mxu0 %v264
        %v323 = vpop.f32.mrf.mxu0
        %v324 = vadd.f32 %v258, %v323
        %v325 = vpop.f32.mrf.mxu0
        %v326 = vadd.f32 %v259, %v325
        %327 = vdwg.mxu0
        %328 = vst [vmem:[%s223] sm:$0xff] %v324
        %329 = vst [vmem:[%s223 + $0x8] sm:$0xff] %v326
        %s330 = sand.u32 %s97, 1
        %s331 = scalar_lea.sflag [#allocation4], %s330
        %s332 = sand.u32 %s97, 1
        %s333 = smul.addr %s332, 16
        %s334 = scalar_lea.vmem [#allocation8], %s333
        // Predicated region
        $region45: #{tpu_custom_call.1} parent=31 // pred_check
          %p335 = pneg %p107
        $region46: #{tpu_custom_call.1} parent=31 // pred_check_branch
          %337 = sbr.rel (%p335) target = $region48
        $region47: #{tpu_custom_call.1} parent=31 // pred_region
          %s338 = smul.u32 2, %s21
          %340 = vsyncadd %s331, 0
          %s341 = smul.addr %s338, 8
          %s342 = scalar_lea.hbm %s3, %s341
          %s343 = sshll.u32 %s334, 4
          %s344 = int_to_ptr.vmem [resolvable:$true] %s343
          %s345 = sshll.u32 %s342, 4
          %s346 = int_to_ptr.hbm [resolvable:$true] %s345
          %351 = dma.vmem_to_hbm [thread:$0]  %s344, 256, %s346, %s331, 128, 128, 8
        $region48: #{tpu_custom_call.1} parent=31 // pred_fallthru
          _
      $region32: #{tpu_custom_call.1} parent=5 // pred_fallthru
        _
      %p352 = scmp.le.s32.totalorder 2, %s16
      // Predicated region
      $region49: #{tpu_custom_call.1} parent=5 // pred_check
        %p353 = pneg %p352
      $region50: #{tpu_custom_call.1} parent=5 // pred_check_branch
        %355 = sbr.rel (%p353) target = $region52
      $region51: #{tpu_custom_call.1} parent=5 // pred_region
        %s356 = ssub.s32 %s16, 2
        // Predicated region
        $region53: #{tpu_custom_call.1} parent=51 // pred_check
          %p357 = pneg %p113
        $region54: #{tpu_custom_call.1} parent=51 // pred_check_branch
          %359 = sbr.rel (%p357) target = $region56
        $region55: #{tpu_custom_call.1} parent=51 // pred_region
          %s360 = sand.u32 %s98, 1
          %s361 = scalar_lea.sflag [#allocation4], %s360
          %s362 = sand.u32 %s98, 1
          %s363 = smul.addr %s362, 16
          %s364 = scalar_lea.vmem [#allocation8], %s363
          %366 = dma.done %s361, 256
        $region56: #{tpu_custom_call.1} parent=51 // pred_fallthru
          _
      $region52: #{tpu_custom_call.1} parent=5 // pred_fallthru
        _
    $region6: #{tpu_custom_call.1} parent=1 // loop_footer
      %s20 = sadd.s32 1, %s16
    $region7: #{tpu_custom_call.1} parent=1 // loop_footer_branch
      %15 = sbr.rel target = $region3
    $region8: #{tpu_custom_call.1} parent=1 // loop_exit
      _
    %367 = vsyncpa [#allocation3], 1
    %s368 = scalar_lea.sflag [#allocation3], 1
    %369 = vsyncpa %s368, 1
    %370 = vsyncpa [#allocation6], 1
    %371 = vsyncpa [#allocation4], 1
    %s372 = scalar_lea.sflag [#allocation4], 1
    %373 = vsyncpa %s372, 1

</llo_original>
